<compile_context>
chip_gen: v7x
topology: tpu7x:2x2x1
jax: 0.10.0
libtpu: 0.0.40
codegen_flags: <defaults>
</compile_context>

<pallas_src>
import jax
import jax.numpy as jnp
from jax.experimental import pallas as pl
from jax.experimental.pallas import tpu as pltpu


def _round_up(x, m):
    return ((x + m - 1) // m) * m


def _make_meta_encoder_kernel(d_sizes, use_vpu):
    """Kernel refs: x_1..x_n, w_1..w_n, bias(1,H), out(block_m,H)."""
    n = len(d_sizes)

    def kernel(*refs):
        x_refs = refs[:n]
        w_refs = refs[n:2 * n]
        b_ref = refs[2 * n]
        o_ref = refs[2 * n + 1]

        acc = None
        if use_vpu:
            # D_in is tiny -> compute on the VPU as K broadcast mul-adds.
            # Tiny-K MXU dots would pay full K-padding, a weight push and a
            # result pop each while using <5% of the MXU.
            for xr, wr, d in zip(x_refs, w_refs, d_sizes):
                x = xr[...].astype(jnp.float32)        # (block_m, d)
                w = wr[...].astype(jnp.float32)        # (d, H)
                for k in range(d):
                    term = x[:, k:k + 1] * w[k:k + 1, :]   # (block_m, H)
                    acc = term if acc is None else acc + term
        else:
            # Sum of partial dots == dot of the concatenation (concat fused).
            for xr, wr in zip(x_refs, w_refs):
                part = jnp.dot(xr[...], wr[...],
                               preferred_element_type=jnp.float32)
                acc = part if acc is None else acc + part

        o_ref[...] = (acc + b_ref[...].astype(jnp.float32)).astype(o_ref.dtype)

    return kernel


def meta_encoder(inputs, weight, bias, *, block_m=None,
                 min_bytes_for_pallas=2 << 20):
    """inputs: list of (B, d_i); weight: (sum d_i, H); bias: (H,) -> (B, H)."""
    inputs = list(inputs)
    assert len(inputs) >= 1
    B = int(inputs[0].shape[0])
    d_sizes = [int(x.shape[-1]) for x in inputs]
    D_in = sum(d_sizes)
    D_in_w, H = (int(s) for s in weight.shape)
    assert D_in == D_in_w, (D_in, D_in_w)
    dtype = inputs[0].dtype
    itemsize = jnp.dtype(dtype).itemsize
    w_itemsize = jnp.dtype(weight.dtype).itemsize

    # Tiny-problem fallback based on total HBM bytes: below a couple of MB the
    # fixed pallas_call launch + DMA setup dominates; a fused XLA dot wins.
    total_bytes = B * (D_in + H) * itemsize + (D_in * H + H) * w_itemsize
    if total_bytes < min_bytes_for_pallas:
        x = jnp.concatenate(inputs, axis=-1)
        return x @ weight + bias

    # Statically split the (unpadded) weight per input chunk (concat fusion).
    w_parts = []
    off = 0
    for d in d_sizes:
        w_parts.append(weight[off:off + d, :])
        off += d
    b2d = bias.reshape(1, H)

    # ---- VMEM budgeting on PADDED (8,128) tile footprints -------------------
    def lanes(n):
        return _round_up(n, 128)

    try:
        phys_vmem = int(pltpu.get_tpu_info().vmem_capacity_bytes)
    except Exception:
        phys_vmem = 64 << 20            # conservative: v7x per-core VMEM
    vmem_cap = min(int(phys_vmem * 0.70), 96 << 20)   # ~45 MiB v7x, ~90 MiB v5e/v6e

    # Resident (constant index_map) weight/bias operands; still double-buffered
    # by default.  TODO(synk): pipeline_mode=pl.Buffered(1) would halve this
    # (only matters at large H).
    fixed_bytes = 2 * (sum(_round_up(d, 8) * lanes(H) * w_itemsize
                           for d in d_sizes)
                       + 8 * lanes(H) * w_itemsize)
    # Per batch-row VMEM bytes: double-buffered x tiles + out tile, plus one
    # f32 accumulator's worth of vreg/VMEM temporaries.  Each x tile occupies
    # lanes rounded up to 128 in VMEM regardless of its logical width.
    per_row = (2 * (sum(lanes(d) for d in d_sizes) + lanes(H)) * itemsize
               + lanes(H) * 4)
    bm_vmem = max(8, ((vmem_cap - fixed_bytes) // per_row) // 8 * 8)

    # ---- Tile-size selection -------------------------------------------------
    if block_m is None:
        block_m = 16384                 # multi-MB tiles: amortize per-step cost
    block_m = max(8, _round_up(int(block_m), 8))      # (8,128) sublane rule
    block_m = min(block_m, _round_up(B, 8))
    if B >= 4096:
        # Keep >= 4 grid steps so both v7x TensorCores get batch tiles.
        block_m = min(block_m, _round_up(pl.cdiv(B, 4), 8))
    block_m = min(block_m, bm_vmem)

    grid = (pl.cdiv(B, block_m),)
    # NOTE: when B % block_m != 0 the last tile reads past the end of the
    # inputs.  This is benign: every output row depends only on its own input
    # row, and the out-of-range output rows are discarded by Pallas.  Do not
    # add any cross-row (in-tile) reduction without masking those rows.

    vmem_needed = fixed_bytes + block_m * per_row
    vmem_limit = int(min(max(2 * vmem_needed, 16 << 20), vmem_cap))

    cost = pl.CostEstimate(
        flops=2 * B * D_in * H,
        transcendentals=0,
        bytes_accessed=(B * D_in * itemsize
                        + (D_in * H + H) * w_itemsize
                        + B * H * itemsize),
    )

    in_specs = [pl.BlockSpec((block_m, d), lambda i: (i, 0)) for d in d_sizes]
    in_specs += [pl.BlockSpec((d, H), lambda i: (0, 0)) for d in d_sizes]
    in_specs.append(pl.BlockSpec((1, H), lambda i: (0, 0)))

    out = pl.pallas_call(
        _make_meta_encoder_kernel(d_sizes, use_vpu=(D_in <= 16)),
        out_shape=jax.ShapeDtypeStruct((B, H), dtype),   # unpadded HBM output
        grid_spec=pltpu.PrefetchScalarGridSpec(
            num_scalar_prefetch=0,
            grid=grid,
            in_specs=in_specs,
            out_specs=pl.BlockSpec((block_m, H), lambda i: (i, 0)),
        ),
        compiler_params=pltpu.CompilerParams(
            dimension_semantics=("parallel",),
            vmem_limit_bytes=vmem_limit,
        ),
        cost_estimate=cost,
    )(*inputs, *w_parts, b2d)

    # Dropout in eval mode is the identity.
    return out


if __name__ == "__main__":
    key = jax.random.PRNGKey(0)
    k1, k2, k3, k4 = jax.random.split(key, 4)

    # Small shapes consistent with Prosit's MetaEncoder: two metadata inputs
    # concatenated to input_size, projected to recurrent_layer_size.
    batch = 64
    d1, d2 = 4, 4
    recurrent_layer_size = 32
    input_size = d1 + d2

    in1 = jax.random.normal(k1, (batch, d1), dtype=jnp.float32)
    in2 = jax.random.normal(k2, (batch, d2), dtype=jnp.float32)
    weight = jax.random.normal(
        k3, (input_size, recurrent_layer_size), dtype=jnp.float32) * 0.1
    bias = jax.random.normal(
        k4, (recurrent_layer_size,), dtype=jnp.float32) * 0.1

    # Force the Pallas path (min_bytes_for_pallas=0) and use a small block_m so
    # the multi-step, software-pipelined grid is exercised at demo shapes.
    # Real workloads should leave block_m=None (auto, multi-MB tiles).
    out = meta_encoder([in1, in2], weight, bias,
                       block_m=16, min_bytes_for_pallas=0)
    out = jax.block_until_ready(out)

    # Reference check against plain JAX (same math as torch Linear + eval dropout).
    ref = jnp.concatenate([in1, in2], axis=-1) @ weight + bias
    assert out.shape == (batch, recurrent_layer_size)
    assert jnp.allclose(out, ref, atol=1e-5, rtol=1e-5), float(
        jnp.max(jnp.abs(out - ref)))

    print("KERNEL_OK")
</pallas_src>

<mosaic_0001>
module attributes {stable_mosaic.version = 11 : i64} {
  func.func @kernel(%arg0: i32, %arg1: memref<16x4xf32, #tpu.memory_space<vmem>>, %arg2: memref<16x4xf32, #tpu.memory_space<vmem>>, %arg3: memref<4x32xf32, #tpu.memory_space<vmem>>, %arg4: memref<4x32xf32, #tpu.memory_space<vmem>>, %arg5: memref<1x32xf32, #tpu.memory_space<vmem>>, %arg6: memref<16x32xf32, #tpu.memory_space<vmem>>) attributes {dimension_semantics = [#tpu.dimension_semantics<parallel>], iteration_bounds = array<i64: 4>, scalar_prefetch = 0 : i64, scratch_operands = 0 : i64, tpu.core_type = #tpu.core_type<tc>, window_params = [{transform_indices = @transform_0, window_bounds = array<i64: 16, 4>}, {transform_indices = @transform_1, window_bounds = array<i64: 16, 4>}, {pipeline_mode = #tpu.pipeline_mode<synchronous>, transform_indices = @transform_2, window_bounds = array<i64: 4, 32>}, {pipeline_mode = #tpu.pipeline_mode<synchronous>, transform_indices = @transform_3, window_bounds = array<i64: 4, 32>}, {pipeline_mode = #tpu.pipeline_mode<synchronous>, transform_indices = @transform_4, window_bounds = array<i64: 1, 32>}, {transform_indices = @transform_5, window_bounds = array<i64: 16, 32>}]} {
    %c0 = arith.constant 0 : index
    %c0_0 = arith.constant 0 : index
    %0 = vector.load %arg1[%c0, %c0_0] : memref<16x4xf32, #tpu.memory_space<vmem>>, vector<16x4xf32>
    %c0_1 = arith.constant 0 : index
    %c0_2 = arith.constant 0 : index
    %1 = vector.load %arg3[%c0_1, %c0_2] : memref<4x32xf32, #tpu.memory_space<vmem>>, vector<4x32xf32>
    %2 = vector.extract_strided_slice %0 {offsets = [0, 0], sizes = [16, 1], strides = [1, 1]} : vector<16x4xf32> to vector<16x1xf32>
    %3 = vector.extract_strided_slice %1 {offsets = [0, 0], sizes = [1, 32], strides = [1, 1]} : vector<4x32xf32> to vector<1x32xf32>
    %4 = vector.broadcast %2 : vector<16x1xf32> to vector<16x32xf32>
    %5 = vector.broadcast %3 : vector<1x32xf32> to vector<16x32xf32>
    %6 = arith.mulf %4, %5 : vector<16x32xf32>
    %7 = vector.extract_strided_slice %0 {offsets = [0, 1], sizes = [16, 1], strides = [1, 1]} : vector<16x4xf32> to vector<16x1xf32>
    %8 = vector.extract_strided_slice %1 {offsets = [1, 0], sizes = [1, 32], strides = [1, 1]} : vector<4x32xf32> to vector<1x32xf32>
    %9 = vector.broadcast %7 : vector<16x1xf32> to vector<16x32xf32>
    %10 = vector.broadcast %8 : vector<1x32xf32> to vector<16x32xf32>
    %11 = arith.mulf %9, %10 : vector<16x32xf32>
    %12 = arith.addf %6, %11 : vector<16x32xf32>
    %13 = vector.extract_strided_slice %0 {offsets = [0, 2], sizes = [16, 1], strides = [1, 1]} : vector<16x4xf32> to vector<16x1xf32>
    %14 = vector.extract_strided_slice %1 {offsets = [2, 0], sizes = [1, 32], strides = [1, 1]} : vector<4x32xf32> to vector<1x32xf32>
    %15 = vector.broadcast %13 : vector<16x1xf32> to vector<16x32xf32>
    %16 = vector.broadcast %14 : vector<1x32xf32> to vector<16x32xf32>
    %17 = arith.mulf %15, %16 : vector<16x32xf32>
    %18 = arith.addf %12, %17 : vector<16x32xf32>
    %19 = vector.extract_strided_slice %0 {offsets = [0, 3], sizes = [16, 1], strides = [1, 1]} : vector<16x4xf32> to vector<16x1xf32>
    %20 = vector.extract_strided_slice %1 {offsets = [3, 0], sizes = [1, 32], strides = [1, 1]} : vector<4x32xf32> to vector<1x32xf32>
    %21 = vector.broadcast %19 : vector<16x1xf32> to vector<16x32xf32>
    %22 = vector.broadcast %20 : vector<1x32xf32> to vector<16x32xf32>
    %23 = arith.mulf %21, %22 : vector<16x32xf32>
    %24 = arith.addf %18, %23 : vector<16x32xf32>
    %c0_3 = arith.constant 0 : index
    %c0_4 = arith.constant 0 : index
    %25 = vector.load %arg2[%c0_3, %c0_4] : memref<16x4xf32, #tpu.memory_space<vmem>>, vector<16x4xf32>
    %c0_5 = arith.constant 0 : index
    %c0_6 = arith.constant 0 : index
    %26 = vector.load %arg4[%c0_5, %c0_6] : memref<4x32xf32, #tpu.memory_space<vmem>>, vector<4x32xf32>
    %27 = vector.extract_strided_slice %25 {offsets = [0, 0], sizes = [16, 1], strides = [1, 1]} : vector<16x4xf32> to vector<16x1xf32>
    %28 = vector.extract_strided_slice %26 {offsets = [0, 0], sizes = [1, 32], strides = [1, 1]} : vector<4x32xf32> to vector<1x32xf32>
    %29 = vector.broadcast %27 : vector<16x1xf32> to vector<16x32xf32>
    %30 = vector.broadcast %28 : vector<1x32xf32> to vector<16x32xf32>
    %31 = arith.mulf %29, %30 : vector<16x32xf32>
    %32 = arith.addf %24, %31 : vector<16x32xf32>
    %33 = vector.extract_strided_slice %25 {offsets = [0, 1], sizes = [16, 1], strides = [1, 1]} : vector<16x4xf32> to vector<16x1xf32>
    %34 = vector.extract_strided_slice %26 {offsets = [1, 0], sizes = [1, 32], strides = [1, 1]} : vector<4x32xf32> to vector<1x32xf32>
    %35 = vector.broadcast %33 : vector<16x1xf32> to vector<16x32xf32>
    %36 = vector.broadcast %34 : vector<1x32xf32> to vector<16x32xf32>
    %37 = arith.mulf %35, %36 : vector<16x32xf32>
    %38 = arith.addf %32, %37 : vector<16x32xf32>
    %39 = vector.extract_strided_slice %25 {offsets = [0, 2], sizes = [16, 1], strides = [1, 1]} : vector<16x4xf32> to vector<16x1xf32>
    %40 = vector.extract_strided_slice %26 {offsets = [2, 0], sizes = [1, 32], strides = [1, 1]} : vector<4x32xf32> to vector<1x32xf32>
    %41 = vector.broadcast %39 : vector<16x1xf32> to vector<16x32xf32>
    %42 = vector.broadcast %40 : vector<1x32xf32> to vector<16x32xf32>
    %43 = arith.mulf %41, %42 : vector<16x32xf32>
    %44 = arith.addf %38, %43 : vector<16x32xf32>
    %45 = vector.extract_strided_slice %25 {offsets = [0, 3], sizes = [16, 1], strides = [1, 1]} : vector<16x4xf32> to vector<16x1xf32>
    %46 = vector.extract_strided_slice %26 {offsets = [3, 0], sizes = [1, 32], strides = [1, 1]} : vector<4x32xf32> to vector<1x32xf32>
    %47 = vector.broadcast %45 : vector<16x1xf32> to vector<16x32xf32>
    %48 = vector.broadcast %46 : vector<1x32xf32> to vector<16x32xf32>
    %49 = arith.mulf %47, %48 : vector<16x32xf32>
    %50 = arith.addf %44, %49 : vector<16x32xf32>
    %c0_7 = arith.constant 0 : index
    %c0_8 = arith.constant 0 : index
    %51 = vector.load %arg5[%c0_7, %c0_8] : memref<1x32xf32, #tpu.memory_space<vmem>>, vector<1x32xf32>
    %52 = vector.broadcast %51 : vector<1x32xf32> to vector<16x32xf32>
    %53 = arith.addf %50, %52 : vector<16x32xf32>
    %c0_9 = arith.constant 0 : index
    %c0_10 = arith.constant 0 : index
    %54 = vector.load %arg6[%c0_9, %c0_10] : memref<16x32xf32, #tpu.memory_space<vmem>>, vector<16x32xf32>
    tpu.vector_store %arg6[%c0_9, %c0_10], %53 {strides = array<i32>} : memref<16x32xf32, #tpu.memory_space<vmem>>, vector<16x32xf32>,
    return
  }
  func.func @transform_0(%arg0: i32) -> (i32, i32) {
    %c0_i32 = arith.constant 0 : i32
    %c0_i32_0 = arith.constant 0 : i32
    return %arg0, %c0_i32 : i32, i32
  }
  func.func @transform_1(%arg0: i32) -> (i32, i32) {
    %c0_i32 = arith.constant 0 : i32
    %c0_i32_0 = arith.constant 0 : i32
    return %arg0, %c0_i32 : i32, i32
  }
  func.func @transform_2(%arg0: i32) -> (i32, i32) {
    %c0_i32 = arith.constant 0 : i32
    %c0_i32_0 = arith.constant 0 : i32
    %c0_i32_1 = arith.constant 0 : i32
    return %c0_i32, %c0_i32_0 : i32, i32
  }
  func.func @transform_3(%arg0: i32) -> (i32, i32) {
    %c0_i32 = arith.constant 0 : i32
    %c0_i32_0 = arith.constant 0 : i32
    %c0_i32_1 = arith.constant 0 : i32
    return %c0_i32, %c0_i32_0 : i32, i32
  }
  func.func @transform_4(%arg0: i32) -> (i32, i32) {
    %c0_i32 = arith.constant 0 : i32
    %c0_i32_0 = arith.constant 0 : i32
    %c0_i32_1 = arith.constant 0 : i32
    return %c0_i32, %c0_i32_0 : i32, i32
  }
  func.func @transform_5(%arg0: i32) -> (i32, i32) {
    %c0_i32 = arith.constant 0 : i32
    %c0_i32_0 = arith.constant 0 : i32
    return %arg0, %c0_i32 : i32, i32
  }
}

</mosaic_0001>

<llo_original>
// kernel: tpu_custom_call.1
$region0: #{tpu_custom_call.1}
  #allocation0 [shape = 'u32[]', space=smem, size = 0x4, offset = 0x4, fixed_abs, tag = 'smem constant byte address 0x4 - core index']
  #allocation1 [shape = 'u32[144,128]{1,0:T(1,128)}', space=vmem, size = 0x12000, scoped, tag = 'internal scratch']
  %s0 = inlined_call_operand.vmem [shape: f32[64,4], index: 0, kind: input, shape index: {}]
  %s1 = inlined_call_operand.vmem [shape: f32[64,4], index: 1, kind: input, shape index: {}]
  %s2 = inlined_call_operand.vmem [shape: f32[4,32], index: 2, kind: input, shape index: {}]
  %s3 = inlined_call_operand.vmem [shape: f32[4,32], index: 3, kind: input, shape index: {}]
  %s4 = inlined_call_operand.vmem [shape: f32[1,32], index: 4, kind: input, shape index: {}]
  %s5 = inlined_call_operand.vmem [shape: f32[64,32], index: 5, kind: output, shape index: {}]
  %s6 = sld [smem:[#allocation0]]
  $region53: #{tpu_custom_call.1} parent=0
    _
  %s8 = ssub.s32 1, %s6
  %s9 = scalar_select 0, %s8, %s6
  loop: start=0, step=1, limit=6
  $region2: #{tpu_custom_call.1} parent=0 // loop_pre_header
    _
  $region3: #{tpu_custom_call.1} parent=0 // loop_header
    %s11 = sphi 0, %s15
    %p12 = scmp.ge.s32.totalorder %s11, 6
    %s21 = sphi 0, %s23
    %s24 = sphi 0, %s21
    %s25 = sphi 0, %s24
    %s41 = sphi 0, %s25
    %s47 = sphi 0, %s49
    %s50 = sphi 0, %s47
    %s51 = sphi 0, %s50
    %s67 = sphi 0, %s51
    %s71 = sphi 0, %s71
    %s73 = sphi 0, %s71
    %s74 = sphi 0, %s73
    %s88 = sphi 0, %s74
    %s92 = sphi 0, %s92
    %s94 = sphi 0, %s92
    %s95 = sphi 0, %s94
    %s109 = sphi 0, %s95
    %s113 = sphi 0, %s113
    %s115 = sphi 0, %s113
    %s116 = sphi 0, %s115
    %s130 = sphi 0, %s116
    %s136 = sphi 0, %s138
    %s139 = sphi 0, %s136
    %s140 = sphi 0, %s139
    %s156 = sphi 0, %s140
  $region4: #{tpu_custom_call.1} parent=0 // loop_header_branch
    %14 = sbr.rel (%p12) target = $region8
  $region5: #{tpu_custom_call.1} parent=0 // loop_body
    %s16 = ssub.s32 %s11, 1
    %s17 = ssub.s32 %s11, 2
    %s18 = sadd.s32 %s11, 1
    %s19 = ssub.s32 %s11, %s18
    %p20 = scmp.eq.s32.totalorder %s19, 0
    %s22 = sadd.s32 %s21, 1
    %s23 = scalar_select %p20, %s21, %s22
    %p26 = pneg %p20
    %p27 = scmp.eq.s32.totalorder %s11, 3
    %p28 = por %p26, %p27
    %p29 = scmp.ne.s32.totalorder %s21, %s24
    %p30 = scmp.eq.s32.totalorder %s11, 0
    %p31 = por %p29, %p30
    %p32 = scmp.ne.s32.totalorder %s21, %s24
    %p33 = scmp.eq.s32.totalorder %s16, 3
    %p34 = por %p32, %p33
    %p35 = scmp.ne.s32.totalorder %s24, %s25
    %p36 = scmp.eq.s32.totalorder %s16, 0
    %p37 = por %p35, %p36
    %p38 = scmp.ne.s32.totalorder %s24, %s25
    %p39 = scmp.eq.s32.totalorder %s17, 3
    %p40 = por %p38, %p39
    %p42 = scmp.ne.s32.totalorder %s25, %s41
    %p43 = scmp.eq.s32.totalorder %s17, 0
    %p44 = por %p42, %p43
    %s45 = ssub.s32 %s11, %s18
    %p46 = scmp.eq.s32.totalorder %s45, 0
    %s48 = sadd.s32 %s47, 1
    %s49 = scalar_select %p46, %s47, %s48
    %p52 = pneg %p46
    %p53 = scmp.eq.s32.totalorder %s11, 3
    %p54 = por %p52, %p53
    %p55 = scmp.ne.s32.totalorder %s47, %s50
    %p56 = scmp.eq.s32.totalorder %s11, 0
    %p57 = por %p55, %p56
    %p58 = scmp.ne.s32.totalorder %s47, %s50
    %p59 = scmp.eq.s32.totalorder %s16, 3
    %p60 = por %p58, %p59
    %p61 = scmp.ne.s32.totalorder %s50, %s51
    %p62 = scmp.eq.s32.totalorder %s16, 0
    %p63 = por %p61, %p62
    %p64 = scmp.ne.s32.totalorder %s50, %s51
    %p65 = scmp.eq.s32.totalorder %s17, 3
    %p66 = por %p64, %p65
    %p68 = scmp.ne.s32.totalorder %s51, %s67
    %p69 = scmp.eq.s32.totalorder %s17, 0
    %p70 = por %p68, %p69
    %s72 = sadd.s32 %s71, 1
    %p75 = scmp.eq.s32.totalorder %s11, 3
    %p76 = scmp.ne.s32.totalorder %s71, %s73
    %p77 = scmp.eq.s32.totalorder %s11, 0
    %p78 = por %p76, %p77
    %p79 = scmp.ne.s32.totalorder %s71, %s73
    %p80 = scmp.eq.s32.totalorder %s16, 3
    %p81 = por %p79, %p80
    %p82 = scmp.ne.s32.totalorder %s73, %s74
    %p83 = scmp.eq.s32.totalorder %s16, 0
    %p84 = por %p82, %p83
    %p85 = scmp.ne.s32.totalorder %s73, %s74
    %p86 = scmp.eq.s32.totalorder %s17, 3
    %p87 = por %p85, %p86
    %p89 = scmp.ne.s32.totalorder %s74, %s88
    %p90 = scmp.eq.s32.totalorder %s17, 0
    %p91 = por %p89, %p90
    %s93 = sadd.s32 %s92, 1
    %p96 = scmp.eq.s32.totalorder %s11, 3
    %p97 = scmp.ne.s32.totalorder %s92, %s94
    %p98 = scmp.eq.s32.totalorder %s11, 0
    %p99 = por %p97, %p98
    %p100 = scmp.ne.s32.totalorder %s92, %s94
    %p101 = scmp.eq.s32.totalorder %s16, 3
    %p102 = por %p100, %p101
    %p103 = scmp.ne.s32.totalorder %s94, %s95
    %p104 = scmp.eq.s32.totalorder %s16, 0
    %p105 = por %p103, %p104
    %p106 = scmp.ne.s32.totalorder %s94, %s95
    %p107 = scmp.eq.s32.totalorder %s17, 3
    %p108 = por %p106, %p107
    %p110 = scmp.ne.s32.totalorder %s95, %s109
    %p111 = scmp.eq.s32.totalorder %s17, 0
    %p112 = por %p110, %p111
    %s114 = sadd.s32 %s113, 1
    %p117 = scmp.eq.s32.totalorder %s11, 3
    %p118 = scmp.ne.s32.totalorder %s113, %s115
    %p119 = scmp.eq.s32.totalorder %s11, 0
    %p120 = por %p118, %p119
    %p121 = scmp.ne.s32.totalorder %s113, %s115
    %p122 = scmp.eq.s32.totalorder %s16, 3
    %p123 = por %p121, %p122
    %p124 = scmp.ne.s32.totalorder %s115, %s116
    %p125 = scmp.eq.s32.totalorder %s16, 0
    %p126 = por %p124, %p125
    %p127 = scmp.ne.s32.totalorder %s115, %s116
    %p128 = scmp.eq.s32.totalorder %s17, 3
    %p129 = por %p127, %p128
    %p131 = scmp.ne.s32.totalorder %s116, %s130
    %p132 = scmp.eq.s32.totalorder %s17, 0
    %p133 = por %p131, %p132
    %s134 = ssub.s32 %s11, %s18
    %p135 = scmp.eq.s32.totalorder %s134, 0
    %s137 = sadd.s32 %s136, 1
    %s138 = scalar_select %p135, %s136, %s137
    %p141 = pneg %p135
    %p142 = scmp.eq.s32.totalorder %s11, 3
    %p143 = por %p141, %p142
    %p144 = scmp.ne.s32.totalorder %s136, %s139
    %p145 = scmp.eq.s32.totalorder %s11, 0
    %p146 = por %p144, %p145
    %p147 = scmp.ne.s32.totalorder %s136, %s139
    %p148 = scmp.eq.s32.totalorder %s16, 3
    %p149 = por %p147, %p148
    %p150 = scmp.ne.s32.totalorder %s139, %s140
    %p151 = scmp.eq.s32.totalorder %s16, 0
    %p152 = por %p150, %p151
    %p153 = scmp.ne.s32.totalorder %s139, %s140
    %p154 = scmp.eq.s32.totalorder %s17, 3
    %p155 = por %p153, %p154
    %p157 = scmp.ne.s32.totalorder %s140, %s156
    %p158 = scmp.eq.s32.totalorder %s17, 0
    %p159 = por %p157, %p158
    %p160 = scmp.le.s32.totalorder 1, %s11
    %p161 = scmp.lt.s32.totalorder %s11, 5
    %p162 = pnand %p160, %p161
    %p163 = pneg %p162
    // Predicated region
    $region9: #{tpu_custom_call.1} parent=5 // pred_check
      _
    $region10: #{tpu_custom_call.1} parent=5 // pred_check_branch
      %165 = sbr.rel (%p162) target = $region12
    $region11: #{tpu_custom_call.1} parent=5 // pred_region
      %s166 = ssub.s32 %s11, 1
      // Predicated region
      $region13: #{tpu_custom_call.1} parent=11 // pred_check
        %p167 = pneg %p84
      $region14: #{tpu_custom_call.1} parent=11 // pred_check_branch
        %169 = sbr.rel (%p167) target = $region16
      $region15: #{tpu_custom_call.1} parent=11 // pred_region
        _
      $region16: #{tpu_custom_call.1} parent=11 // pred_fallthru
        _
      // Predicated region
      $region17: #{tpu_custom_call.1} parent=11 // pred_check
        %p170 = pneg %p105
      $region18: #{tpu_custom_call.1} parent=11 // pred_check_branch
        %172 = sbr.rel (%p170) target = $region20
      $region19: #{tpu_custom_call.1} parent=11 // pred_region
        _
      $region20: #{tpu_custom_call.1} parent=11 // pred_fallthru
        _
      // Predicated region
      $region21: #{tpu_custom_call.1} parent=11 // pred_check
        %p173 = pneg %p126
      $region22: #{tpu_custom_call.1} parent=11 // pred_check_branch
        %175 = sbr.rel (%p173) target = $region24
      $region23: #{tpu_custom_call.1} parent=11 // pred_region
        _
      $region24: #{tpu_custom_call.1} parent=11 // pred_fallthru
        _
    $region12: #{tpu_custom_call.1} parent=5 // pred_fallthru
      _
    %p176 = scmp.lt.s32.totalorder %s11, 4
    // Predicated region
    $region25: #{tpu_custom_call.1} parent=5 // pred_check
      %p177 = pneg %p176
    $region26: #{tpu_custom_call.1} parent=5 // pred_check_branch
      %179 = sbr.rel (%p177) target = $region28
    $region27: #{tpu_custom_call.1} parent=5 // pred_region
      // Predicated region
      $region29: #{tpu_custom_call.1} parent=27 // pred_check
        %p180 = pneg %p31
      $region30: #{tpu_custom_call.1} parent=27 // pred_check_branch
        %182 = sbr.rel (%p180) target = $region32
      $region31: #{tpu_custom_call.1} parent=27 // pred_region
        %s183 = smul.u32 2, %s11
        %p184 = scmp.lt.s32.totalorder %s183, 7
        %s185 = scalar_select %p184, %s183, 7
        %s186 = smul.addr %s185, 8
        %s187 = scalar_lea.vmem %s0, %s186
        %s188 = smul.u32 2, %s11
      $region32: #{tpu_custom_call.1} parent=27 // pred_fallthru
        _
      // Predicated region
      $region33: #{tpu_custom_call.1} parent=27 // pred_check
        %p189 = pneg %p57
      $region34: #{tpu_custom_call.1} parent=27 // pred_check_branch
        %191 = sbr.rel (%p189) target = $region36
      $region35: #{tpu_custom_call.1} parent=27 // pred_region
        %s192 = smul.u32 2, %s11
        %p193 = scmp.lt.s32.totalorder %s192, 7
        %s194 = scalar_select %p193, %s192, 7
        %s195 = smul.addr %s194, 8
        %s196 = scalar_lea.vmem %s1, %s195
        %s197 = smul.u32 2, %s11
      $region36: #{tpu_custom_call.1} parent=27 // pred_fallthru
        _
    $region28: #{tpu_custom_call.1} parent=5 // pred_fallthru
      _
    %p198 = scmp.le.s32.totalorder 1, %s11
    %p199 = scmp.lt.s32.totalorder %s11, 5
    %p200 = pnand %p198, %p199
    %p201 = pneg %p200
    // Predicated region
    $region37: #{tpu_custom_call.1} parent=5 // pred_check
      _
    $region38: #{tpu_custom_call.1} parent=5 // pred_check_branch
      %203 = sbr.rel (%p200) target = $region40
    $region39: #{tpu_custom_call.1} parent=5 // pred_region
      %s204 = ssub.s32 %s11, 1
      %s205 = smul.u32 2, %s16
      %p206 = scmp.lt.s32.totalorder %s205, 7
      %s207 = scalar_select %p206, %s205, 7
      %s208 = smul.addr %s207, 8
      %s209 = scalar_lea.vmem %s0, %s208
      %p210 = pneg %p37
      %p211 = pneg %p34
      %s212 = smul.u32 2, %s16
      %p213 = scmp.lt.s32.totalorder %s212, 7
      %s214 = scalar_select %p213, %s212, 7
      %s215 = smul.addr %s214, 8
      %s216 = scalar_lea.vmem %s1, %s215
      %p217 = pneg %p63
      %p218 = pneg %p60
      %p219 = pneg %p84
      %p220 = pneg %p81
      %p221 = pneg %p105
      %p222 = pneg %p102
      %p223 = pneg %p126
      %p224 = pneg %p123
      %p225 = pneg %p152
      %p226 = pneg %p149
      %s227 = smul.u32 2, %s16
      %p228 = scmp.lt.s32.totalorder %s227, 7
      %s229 = scalar_select %p228, %s227, 7
      %s230 = smul.addr %s229, 8
      %s231 = scalar_lea.vmem %s5, %s230
      %s232 = smul.u32 2, %s16
      %p233 = scmp.lt.s32.totalorder %s232, 7
      %s234 = scalar_select %p233, %s232, 7
      %s235 = smul.addr %s234, 8
      %s236 = scalar_lea.vmem %s0, %s235
      %s237 = smul.u32 2, %s16
      %s238 = smul.u32 2, %s16
      %p239 = scmp.lt.s32.totalorder %s238, 7
      %s240 = scalar_select %p239, %s238, 7
      %s241 = smul.addr %s240, 8
      %s242 = scalar_lea.vmem %s1, %s241
      %s243 = smul.u32 2, %s16
      %s244 = smul.u32 2, %s16
      %p245 = scmp.lt.s32.totalorder %s244, 7
      %s246 = scalar_select %p245, %s244, 7
      %s247 = smul.addr %s246, 8
      %s248 = scalar_lea.vmem %s5, %s247
      %s249 = smul.u32 2, %s16
      %v250 = vld [vmem:[%s236] sm:$0xff]
      %v251 = vld [vmem:[%s236 + $0x8] sm:$0xff]
      %v252 = vld [vmem:[%s2] sm:$0xf]
      %254 = vset.pattern.permute.xlu0 0
      %255 = vperm.xlu0 %254, %v250
      %v256 = vpop.permute.xlu0 %255
      %259 = vset.pattern.permute.xlu0 0
      %260 = vperm.xlu0 %259, %v251
      %v261 = vpop.permute.xlu0 %260
      %v263 = vlaneseq
      %v264 = vshrl.u32 %v263, 7
      %v265 = vsub.s32 0, %v264
      %v266 = vrot.slane %v252, %v265
      %v267 = vmul.f32 %v256, %v266
      %v268 = vmul.f32 %v261, %v266
      %269 = vset.pattern.permute.xlu0 1
      %270 = vperm.xlu0 %269, %v250
      %v271 = vpop.permute.xlu0 %270
      %273 = vset.pattern.permute.xlu0 1
      %274 = vperm.xlu0 %273, %v251
      %v275 = vpop.permute.xlu0 %274
      %v277 = vlaneseq
      %v278 = vshrl.u32 %v277, 7
      %v279 = vsub.s32 1, %v278
      %v280 = vrot.slane %v252, %v279
      %v281 = vmul.f32 %v271, %v280
      %v282 = vmul.f32 %v275, %v280
      %v283 = vadd.f32 %v267, %v281
      %v284 = vadd.f32 %v268, %v282
      %285 = vset.pattern.permute.xlu0 2
      %286 = vperm.xlu0 %285, %v250
      %v287 = vpop.permute.xlu0 %286
      %289 = vset.pattern.permute.xlu0 2
      %290 = vperm.xlu0 %289, %v251
      %v291 = vpop.permute.xlu0 %290
      %v293 = vlaneseq
      %v294 = vshrl.u32 %v293, 7
      %v295 = vsub.s32 2, %v294
      %v296 = vrot.slane %v252, %v295
      %v297 = vmul.f32 %v287, %v296
      %v298 = vmul.f32 %v291, %v296
      %v299 = vadd.f32 %v283, %v297
      %v300 = vadd.f32 %v284, %v298
      %301 = vset.pattern.permute.xlu0 3
      %302 = vperm.xlu0 %301, %v250
      %v303 = vpop.permute.xlu0 %302
      %305 = vset.pattern.permute.xlu0 3
      %306 = vperm.xlu0 %305, %v251
      %v307 = vpop.permute.xlu0 %306
      %v309 = vlaneseq
      %v310 = vshrl.u32 %v309, 7
      %v311 = vsub.s32 3, %v310
      %v312 = vrot.slane %v252, %v311
      %v313 = vmul.f32 %v303, %v312
      %v314 = vmul.f32 %v307, %v312
      %v315 = vadd.f32 %v299, %v313
      %v316 = vadd.f32 %v300, %v314
      %v317 = vld [vmem:[%s242] sm:$0xff]
      %v318 = vld [vmem:[%s242 + $0x8] sm:$0xff]
      %v319 = vld [vmem:[%s3] sm:$0xf]
      %321 = vset.pattern.permute.xlu0 0
      %322 = vperm.xlu0 %321, %v317
      %v323 = vpop.permute.xlu0 %322
      %326 = vset.pattern.permute.xlu0 0
      %327 = vperm.xlu0 %326, %v318
      %v328 = vpop.permute.xlu0 %327
      %v330 = vlaneseq
      %v331 = vshrl.u32 %v330, 7
      %v332 = vsub.s32 0, %v331
      %v333 = vrot.slane %v319, %v332
      %v334 = vmul.f32 %v323, %v333
      %v335 = vmul.f32 %v328, %v333
      %v336 = vadd.f32 %v315, %v334
      %v337 = vadd.f32 %v316, %v335
      %338 = vset.pattern.permute.xlu0 1
      %339 = vperm.xlu0 %338, %v317
      %v340 = vpop.permute.xlu0 %339
      %342 = vset.pattern.permute.xlu0 1
      %343 = vperm.xlu0 %342, %v318
      %v344 = vpop.permute.xlu0 %343
      %v346 = vlaneseq
      %v347 = vshrl.u32 %v346, 7
      %v348 = vsub.s32 1, %v347
      %v349 = vrot.slane %v319, %v348
      %v350 = vmul.f32 %v340, %v349
      %v351 = vmul.f32 %v344, %v349
      %v352 = vadd.f32 %v336, %v350
      %v353 = vadd.f32 %v337, %v351
      %354 = vset.pattern.permute.xlu0 2
      %355 = vperm.xlu0 %354, %v317
      %v356 = vpop.permute.xlu0 %355
      %358 = vset.pattern.permute.xlu0 2
      %359 = vperm.xlu0 %358, %v318
      %v360 = vpop.permute.xlu0 %359
      %v362 = vlaneseq
      %v363 = vshrl.u32 %v362, 7
      %v364 = vsub.s32 2, %v363
      %v365 = vrot.slane %v319, %v364
      %v366 = vmul.f32 %v356, %v365
      %v367 = vmul.f32 %v360, %v365
      %v368 = vadd.f32 %v352, %v366
      %v369 = vadd.f32 %v353, %v367
      %370 = vset.pattern.permute.xlu0 3
      %371 = vperm.xlu0 %370, %v317
      %v372 = vpop.permute.xlu0 %371
      %374 = vset.pattern.permute.xlu0 3
      %375 = vperm.xlu0 %374, %v318
      %v376 = vpop.permute.xlu0 %375
      %v378 = vlaneseq
      %v379 = vshrl.u32 %v378, 7
      %v380 = vsub.s32 3, %v379
      %v381 = vrot.slane %v319, %v380
      %v382 = vmul.f32 %v372, %v381
      %v383 = vmul.f32 %v376, %v381
      %v384 = vadd.f32 %v368, %v382
      %v385 = vadd.f32 %v369, %v383
      %v386 = vld [vmem:[%s4] sm:$0x1]
      %v388 = vlaneseq
      %v389 = vshrl.u32 %v388, 7
      %v390 = vsub.s32 0, %v389
      %v391 = vrot.slane %v386, %v390
      %v393 = vadd.f32 %v384, %v391
      %v394 = vadd.f32 %v385, %v391
      %vm395 = vcmask 261120
      %396 = vst.msk [vmem:[%s248] sm:$0xff] %vm395, %v393
      %397 = vst.msk [vmem:[%s248 + $0x8] sm:$0xff] %vm395, %v394
      %s398 = smul.u32 2, %s16
      %p399 = scmp.lt.s32.totalorder %s398, 7
      %s400 = scalar_select %p399, %s398, 7
      %s401 = smul.addr %s400, 8
      %s402 = scalar_lea.vmem %s5, %s401
      // Predicated region
      $region41: #{tpu_custom_call.1} parent=39 // pred_check
        %p403 = pneg %p149
      $region42: #{tpu_custom_call.1} parent=39 // pred_check_branch
        %405 = sbr.rel (%p403) target = $region44
      $region43: #{tpu_custom_call.1} parent=39 // pred_region
        %s406 = smul.u32 2, %s16
      $region44: #{tpu_custom_call.1} parent=39 // pred_fallthru
        _
    $region40: #{tpu_custom_call.1} parent=5 // pred_fallthru
      _
    %p407 = scmp.le.s32.totalorder 2, %s11
    // Predicated region
    $region45: #{tpu_custom_call.1} parent=5 // pred_check
      %p408 = pneg %p407
    $region46: #{tpu_custom_call.1} parent=5 // pred_check_branch
      %410 = sbr.rel (%p408) target = $region48
    $region47: #{tpu_custom_call.1} parent=5 // pred_region
      %s411 = ssub.s32 %s11, 2
      // Predicated region
      $region49: #{tpu_custom_call.1} parent=47 // pred_check
        %p412 = pneg %p155
      $region50: #{tpu_custom_call.1} parent=47 // pred_check_branch
        %414 = sbr.rel (%p412) target = $region52
      $region51: #{tpu_custom_call.1} parent=47 // pred_region
        %s415 = smul.u32 2, %s17
        %p416 = scmp.lt.s32.totalorder %s415, 7
        %s417 = scalar_select %p416, %s415, 7
        %s418 = smul.addr %s417, 8
        %s419 = scalar_lea.vmem %s5, %s418
      $region52: #{tpu_custom_call.1} parent=47 // pred_fallthru
        _
    $region48: #{tpu_custom_call.1} parent=5 // pred_fallthru
      _
  $region6: #{tpu_custom_call.1} parent=0 // loop_footer
    %s15 = sadd.s32 1, %s11
  $region7: #{tpu_custom_call.1} parent=0 // loop_footer_branch
    %10 = sbr.rel target = $region3
  $region8: #{tpu_custom_call.1} parent=0 // loop_exit
    _

</llo_original>
